<compile_context>
chip_gen: v7x
topology: tpu7x:2x2x1
jax: 0.10.0
libtpu: 0.0.40
codegen_flags: <defaults>
</compile_context>

<pallas_src>
import jax
import jax.numpy as jnp
from jax.experimental import pallas as pl
from jax.experimental.pallas import tpu as pltpu

_MIB = 1024 * 1024


def _round_up(x, m):
    return (x + m - 1) // m * m


def _pick_div(total, desired, align=128):
    """Largest divisor of `total` that is <= desired and a multiple of `align`; else `total`."""
    d = (min(desired, total) // align) * align
    while d >= align:
        if total % d == 0:
            return d
        d -= align
    return total


def _next_smaller_div(total, current, align=128):
    """Largest divisor of `total` strictly below `current` that is a multiple of `align`."""
    d = ((current - 1) // align) * align
    while d >= align:
        if total % d == 0:
            return d
        d -= align
    return None


def _vmem_capacity_bytes():
    try:
        return int(pltpu.get_tpu_info().vmem_capacity_bytes)
    except Exception:
        pass
    try:
        kind = jax.devices()[0].device_kind.lower()
        if "v7" in kind:
            return 64 * _MIB
    except Exception:
        pass
    return 128 * _MIB


def prepare_weights(w1, w2, w3, compute_dtype=jnp.bfloat16):
    """One-time (load-time) weight prep: transpose PyTorch (out,in) layout and cast.

    w1 (gate_proj): (hidden, in_dim)  -> returns (in_dim, hidden)
    w2 (down_proj): (out_dim, hidden) -> returns (hidden, out_dim)
    w3 (up_proj):   (hidden, in_dim)  -> returns (in_dim, hidden)

    Do this once when loading the checkpoint, NOT per forward call, so the kernel never
    pays an extra HBM pass for casts/transposes.
    """
    dt = compute_dtype if compute_dtype is not None else w1.dtype
    w1t = jnp.asarray(w1).T.astype(dt)
    w2t = jnp.asarray(w2).T.astype(dt)
    w3t = jnp.asarray(w3).T.astype(dt)
    return w1t, w2t, w3t


def _ffn_kernel(x_ref, w1_ref, w3_ref, w2_ref, o_ref, acc_ref, act_ref=None):
    """Fused SwiGLU FFN block.

    grid = (Mp // tm, out_dim // tn, hidden // th); hidden is the reduction axis (last).

    x_ref  : (tm, D)      row block, full in_dim (compute dtype)
    w1_ref : (D, th)      gate_proj slice (pre-transposed layout)
    w3_ref : (D, th)      up_proj slice
    w2_ref : (th, tn)     down_proj slice
    o_ref  : (tm, tn)     output block (resident across the hidden axis)
    acc_ref: (tm, tn)     f32 accumulator scratch
    act_ref: (tm, hidden) optional SwiGLU activation cache (only when out_dim is tiled)
    """
    n = pl.program_id(1)
    h = pl.program_id(2)
    th = w2_ref.shape[0]

    def swiglu():
        x = x_ref[...]
        g = jnp.dot(x, w1_ref[...], preferred_element_type=jnp.float32)  # (tm, th)
        u = jnp.dot(x, w3_ref[...], preferred_element_type=jnp.float32)  # (tm, th)
        # SiLU in f32; exp and approx reciprocal both run on the EUP slot.
        sig = pl.reciprocal(1.0 + jnp.exp(-g), approx=True)
        return (g * sig * u).astype(w2_ref.dtype)

    if act_ref is None:
        a = swiglu()
    else:
        # out_dim is tiled: compute gate/up only for the first n block and cache the
        # activation; later n blocks only run the down-proj contraction.
        off = pl.multiple_of(h * th, 128)

        @pl.when(n == 0)
        def _():
            act_ref[:, pl.ds(off, th)] = swiglu()

        a = act_ref[:, pl.ds(off, th)]

    partial = jnp.dot(a, w2_ref[...], preferred_element_type=jnp.float32)  # (tm, tn)

    @pl.when(h == 0)
    def _():
        acc_ref[...] = partial          # first step: assign (no zero-init pass)

    @pl.when(h > 0)
    def _():
        acc_ref[...] += partial

    @pl.when(h == pl.num_programs(2) - 1)
    def _():
        o_ref[...] = acc_ref[...].astype(o_ref.dtype)


def feed_forward(x, w1t, w2t, w3t, *, tm=None, th=None, tn=None,
                 out_dtype=None, weight_buffer_count=2):
    """SwiGLU FFN forward: (silu(x @ w1t) * (x @ w3t)) @ w2t.

    x   : (..., in_dim)
    w1t : (in_dim, hidden)   gate_proj, pre-transposed + pre-cast (see prepare_weights)
    w2t : (hidden, out_dim)  down_proj
    w3t : (in_dim, hidden)   up_proj

    The compute dtype is the weights' dtype (store them in bf16 on all current TPUs);
    accumulation and the SiLU are f32. Only the activations are cast per call.
    """
    in_dim = x.shape[-1]
    lead = x.shape[:-1]
    out_dtype = x.dtype if out_dtype is None else out_dtype

    hidden = w1t.shape[1]
    out_dim = w2t.shape[1]
    assert w1t.shape == (in_dim, hidden), (w1t.shape, (in_dim, hidden))
    assert w3t.shape == (in_dim, hidden), (w3t.shape, (in_dim, hidden))
    assert w2t.shape == (hidden, out_dim), (w2t.shape, (hidden, out_dim))

    cdt = w1t.dtype
    bpe = jnp.dtype(cdt).itemsize
    obpe = jnp.dtype(out_dtype).itemsize

    x2 = x.reshape(-1, in_dim)
    if x2.dtype != cdt:
        x2 = x2.astype(cdt)          # cheap activation cast; weights stay untouched in HBM
    M = x2.shape[0]

    cap = _vmem_capacity_bytes()
    budget = min(int(cap * 0.85), cap - 8 * _MIB)   # headroom for compiler scratch / DMA
    big_vmem = cap >= 96 * _MIB

    # ---- row (M) tiling: sublane-pack aligned; minimize #M-blocks first, then padding.
    pack = max(8, 32 // bpe)                         # 8 rows f32, 16 bf16, 32 int8/fp8
    Mp_min = _round_up(max(M, 1), pack)
    tm_desired = (512 if big_vmem else 256) if tm is None else max(pack, _round_up(tm, pack))
    tm_cap = min(tm_desired, Mp_min)
    if tm_cap >= Mp_min:
        tm_sel, Mp = Mp_min, Mp_min
    else:
        best = None
        for cand in range(tm_cap, pack - 1, -pack):
            mp_c = _round_up(M, cand)
            key = (mp_c // cand, mp_c, -cand)        # fewest blocks, least padding, biggest tile
            if best is None or key < best[0]:
                best = (key, cand, mp_c)
        _, tm_sel, Mp = best

    # ---- hidden (reduction) tiling.
    th_desired = th if th is not None else (512 if (big_vmem and hidden % 512 == 0) else 256)
    th_sel = _pick_div(hidden, th_desired, 128)

    # ---- out_dim tiling: default none (avoids re-streaming w1/w3 per n block).
    if tn is not None and 0 < tn < out_dim and out_dim % tn == 0 and tn % 128 == 0:
        tn_sel = tn
    else:
        tn_sel = out_dim
    use_cache = tn_sel < out_dim

    # NOTE(megacore): when the grid has >=2 M blocks (or n blocks without the activation
    # cache) the "parallel" axes already expose work to both v7x TensorCores. We do NOT
    # force-split a single-block decode call: in that HBM-bound regime splitting only
    # duplicates the weight stream over the shared HBM interface.

    def footprint(tm_, th_, tn_, cache):
        f = 2 * tm_ * in_dim * bpe           # x block (double-buffered)
        f += 2 * 2 * in_dim * th_ * bpe      # w1t + w3t blocks
        f += 2 * th_ * tn_ * bpe             # w2t block
        f += 2 * tm_ * tn_ * obpe            # output block
        f += tm_ * tn_ * 4                   # f32 accumulator scratch
        f += 3 * tm_ * th_ * 4               # g/u/silu f32 temporaries (headroom)
        if cache:
            f += tm_ * hidden * bpe          # SwiGLU activation cache
        return f

    # Auto-shrink to fit the VMEM budget: th first, then tile tn (with activation cache),
    # then tm — instead of just clamping vmem_limit_bytes and hoping.
    while footprint(tm_sel, th_sel, tn_sel, use_cache) > budget:
        if th_sel > 128:
            new_th = _pick_div(hidden, max(128, th_sel // 2), 128)
            if new_th < th_sel:
                th_sel = new_th
                continue
        new_tn = _next_smaller_div(out_dim, tn_sel, 128)
        if new_tn is not None:
            tn_sel = new_tn
            use_cache = True
            continue
        if tm_sel > pack:
            tm_sel = max(pack, _round_up(tm_sel // 2, pack))
            Mp = _round_up(M, tm_sel)
            continue
        break  # smallest sensible tiles; let the compiler cope

    if Mp != M:
        x2 = jnp.pad(x2, ((0, Mp - M), (0, 0)))     # silu(0)*0 == 0 -> padded rows are benign

    h_blocks = hidden // th_sel
    n_blocks = out_dim // tn_sel
    grid = (Mp // tm_sel, n_blocks, h_blocks)

    if use_cache:
        # For n > 0 the cached activation is reused; freeze the w1/w3 block index at its
        # last value so the pipeline does not re-stream the gate/up weights per n block.
        def w13_map(i, n, h):
            return (0, jnp.where(n == 0, h, h_blocks - 1))
    else:
        def w13_map(i, n, h):
            return (0, h)

    wkw = {} if weight_buffer_count == 2 else dict(pipeline_mode=pl.Buffered(weight_buffer_count))
    in_specs = [
        pl.BlockSpec((tm_sel, in_dim), lambda i, n, h: (i, 0)),           # x rows
        pl.BlockSpec((in_dim, th_sel), w13_map, **wkw),                    # gate_proj slice
        pl.BlockSpec((in_dim, th_sel), w13_map, **wkw),                    # up_proj slice
        pl.BlockSpec((th_sel, tn_sel), lambda i, n, h: (h, n), **wkw),     # down_proj slice
    ]

    scratch = [pltpu.VMEM((tm_sel, tn_sel), jnp.float32)]
    if use_cache:
        scratch.append(pltpu.VMEM((tm_sel, hidden), cdt))

    flops = 2 * Mp * (2 * in_dim * hidden + hidden * out_dim)
    bytes_accessed = ((Mp // tm_sel) * (2 * in_dim * hidden + hidden * out_dim) * bpe
                      + Mp * in_dim * bpe + Mp * out_dim * obpe)
    cost = pl.CostEstimate(flops=int(flops), transcendentals=int(Mp * hidden),
                           bytes_accessed=int(bytes_accessed))

    out = pl.pallas_call(
        _ffn_kernel,
        out_shape=jax.ShapeDtypeStruct((Mp, out_dim), out_dtype),
        grid_spec=pltpu.PrefetchScalarGridSpec(
            num_scalar_prefetch=0,
            grid=grid,
            in_specs=in_specs,
            out_specs=pl.BlockSpec((tm_sel, tn_sel), lambda i, n, h: (i, n)),
            scratch_shapes=scratch,
        ),
        compiler_params=pltpu.CompilerParams(
            dimension_semantics=("parallel",
                                 "arbitrary" if use_cache else "parallel",
                                 "arbitrary"),
            vmem_limit_bytes=int(budget)),
        cost_estimate=cost,
    )(x2, w1t, w3t, w2t)

    if Mp != M:
        out = out[:M]
    return out.reshape(*lead, out_dim)


if __name__ == "__main__":
    # Small shapes consistent with the module: x is (..., in_dim).
    batch, seq = 2, 8
    in_dim, hidden_dim, out_dim = 128, 512, 128

    key = jax.random.PRNGKey(0)
    kx, k1, k2, k3 = jax.random.split(key, 4)

    x = jax.random.normal(kx, (batch, seq, in_dim), dtype=jnp.float32)
    # PyTorch nn.Linear weight layout (out_features, in_features), no bias.
    w1 = jax.random.normal(k1, (hidden_dim, in_dim), dtype=jnp.float32) * 0.05   # gate_proj
    w2 = jax.random.normal(k2, (out_dim, hidden_dim), dtype=jnp.float32) * 0.05  # down_proj
    w3 = jax.random.normal(k3, (hidden_dim, in_dim), dtype=jnp.float32) * 0.05   # up_proj

    # One-time weight prep (transpose + bf16 cast) at "load time", not per call.
    w1t, w2t, w3t = prepare_weights(w1, w2, w3, compute_dtype=jnp.bfloat16)

    out = feed_forward(x, w1t, w2t, w3t)
    out = jax.block_until_ready(out)

    # Pure-JAX reference on the same bf16 compute path (f32 accumulation).
    xc = x.reshape(-1, in_dim).astype(jnp.bfloat16)
    g = jnp.dot(xc, w1t, preferred_element_type=jnp.float32)
    u = jnp.dot(xc, w3t, preferred_element_type=jnp.float32)
    a = (g * jax.nn.sigmoid(g) * u).astype(jnp.bfloat16)
    ref = jnp.dot(a, w2t, preferred_element_type=jnp.float32).astype(x.dtype)
    ref = ref.reshape(batch, seq, out_dim)

    assert out.shape == (batch, seq, out_dim)
    max_err = float(jnp.max(jnp.abs(out - ref)))
    assert jnp.allclose(out, ref, atol=5e-2, rtol=5e-2), max_err

    print("KERNEL_OK")
</pallas_src>

<mosaic_0001>
module attributes {stable_mosaic.version = 11 : i64} {
  func.func @_ffn_kernel(%arg0: i32, %arg1: i32, %arg2: i32, %arg3: memref<16x128xbf16, #tpu.memory_space<vmem>>, %arg4: memref<128x512xbf16, #tpu.memory_space<vmem>>, %arg5: memref<128x512xbf16, #tpu.memory_space<vmem>>, %arg6: memref<512x128xbf16, #tpu.memory_space<vmem>>, %arg7: memref<16x128xf32, #tpu.memory_space<vmem>>, %arg8: memref<16x128xf32, #tpu.memory_space<vmem>>) attributes {dimension_semantics = [#tpu.dimension_semantics<parallel>, #tpu.dimension_semantics<parallel>, #tpu.dimension_semantics<arbitrary>], iteration_bounds = array<i64: 1, 1, 1>, scalar_prefetch = 0 : i64, scratch_operands = 1 : i64, tpu.core_type = #tpu.core_type<tc>, window_params = [{transform_indices = @transform_0, window_bounds = array<i64: 16, 128>}, {transform_indices = @transform_1, window_bounds = array<i64: 128, 512>}, {transform_indices = @transform_2, window_bounds = array<i64: 128, 512>}, {transform_indices = @transform_3, window_bounds = array<i64: 512, 128>}, {transform_indices = @transform_4, window_bounds = array<i64: 16, 128>}]} {
    %c0 = arith.constant 0 : index
    %c0_0 = arith.constant 0 : index
    %0 = vector.load %arg3[%c0, %c0_0] : memref<16x128xbf16, #tpu.memory_space<vmem>>, vector<16x128xbf16>
    %c0_1 = arith.constant 0 : index
    %c0_2 = arith.constant 0 : index
    %1 = vector.load %arg4[%c0_1, %c0_2] : memref<128x512xbf16, #tpu.memory_space<vmem>>, vector<128x512xbf16>
    %cst = arith.constant dense<0.000000e+00> : vector<16x512xf32>
    %2 = tpu.matmul %0, %1, %cst {dimension_numbers = #tpu.dot_dimension_numbers<[1], [0], [0], [1], [0, 0, 1, 1], [], []>} : vector<16x128xbf16>, vector<128x512xbf16>, vector<16x512xf32> -> vector<16x512xf32>
    %c0_3 = arith.constant 0 : index
    %c0_4 = arith.constant 0 : index
    %3 = vector.load %arg5[%c0_3, %c0_4] : memref<128x512xbf16, #tpu.memory_space<vmem>>, vector<128x512xbf16>
    %cst_5 = arith.constant dense<0.000000e+00> : vector<16x512xf32>
    %4 = tpu.matmul %0, %3, %cst_5 {dimension_numbers = #tpu.dot_dimension_numbers<[1], [0], [0], [1], [0, 0, 1, 1], [], []>} : vector<16x128xbf16>, vector<128x512xbf16>, vector<16x512xf32> -> vector<16x512xf32>
    %cst_6 = arith.constant 0.000000e+00 : f32
    %5 = vector.broadcast %cst_6 : f32 to vector<16x512xf32>
    %6 = arith.subf %5, %2 : vector<16x512xf32>
    %7 = math.exp %6 : vector<16x512xf32>
    %cst_7 = arith.constant 1.000000e+00 : f32
    %8 = vector.broadcast %cst_7 : f32 to vector<16x512xf32>
    %9 = arith.addf %8, %7 : vector<16x512xf32>
    %10 = tpu.reciprocal %9 {approx = true} : vector<16x512xf32> -> vector<16x512xf32>
    %11 = arith.mulf %2, %10 : vector<16x512xf32>
    %12 = arith.mulf %11, %4 : vector<16x512xf32>
    %13 = arith.truncf %12 : vector<16x512xf32> to vector<16x512xbf16>
    %c0_8 = arith.constant 0 : index
    %c0_9 = arith.constant 0 : index
    %14 = vector.load %arg6[%c0_8, %c0_9] : memref<512x128xbf16, #tpu.memory_space<vmem>>, vector<512x128xbf16>
    %cst_10 = arith.constant dense<0.000000e+00> : vector<16x128xf32>
    %15 = tpu.matmul %13, %14, %cst_10 {dimension_numbers = #tpu.dot_dimension_numbers<[1], [0], [0], [1], [0, 0, 1, 1], [], []>} : vector<16x512xbf16>, vector<512x128xbf16>, vector<16x128xf32> -> vector<16x128xf32>
    %c0_i32 = arith.constant 0 : i32
    %16 = arith.cmpi eq, %arg2, %c0_i32 : i32
    %17 = arith.extui %16 : i1 to i32
    %c0_i32_11 = arith.constant 0 : i32
    %18 = arith.cmpi ne, %17, %c0_i32_11 : i32
    scf.if %18 {
      %c0_16 = arith.constant 0 : index
      %c0_17 = arith.constant 0 : index
      %25 = vector.load %arg8[%c0_16, %c0_17] : memref<16x128xf32, #tpu.memory_space<vmem>>, vector<16x128xf32>
      tpu.vector_store %arg8[%c0_16, %c0_17], %15 {strides = array<i32>} : memref<16x128xf32, #tpu.memory_space<vmem>>, vector<16x128xf32>,
    } else {
    }
    %c0_i32_12 = arith.constant 0 : i32
    %19 = arith.cmpi sgt, %arg2, %c0_i32_12 : i32
    %20 = arith.extui %19 : i1 to i32
    %c0_i32_13 = arith.constant 0 : i32
    %21 = arith.cmpi ne, %20, %c0_i32_13 : i32
    scf.if %21 {
      %c0_16 = arith.constant 0 : index
      %c0_17 = arith.constant 0 : index
      %25 = vector.load %arg8[%c0_16, %c0_17] : memref<16x128xf32, #tpu.memory_space<vmem>>, vector<16x128xf32>
      %26 = arith.addf %25, %15 : vector<16x128xf32>
      %c0_18 = arith.constant 0 : index
      %c0_19 = arith.constant 0 : index
      %27 = vector.load %arg8[%c0_18, %c0_19] : memref<16x128xf32, #tpu.memory_space<vmem>>, vector<16x128xf32>
      tpu.vector_store %arg8[%c0_18, %c0_19], %26 {strides = array<i32>} : memref<16x128xf32, #tpu.memory_space<vmem>>, vector<16x128xf32>,
    } else {
    }
    %c0_i32_14 = arith.constant 0 : i32
    %22 = arith.cmpi eq, %arg2, %c0_i32_14 : i32
    %23 = arith.extui %22 : i1 to i32
    %c0_i32_15 = arith.constant 0 : i32
    %24 = arith.cmpi ne, %23, %c0_i32_15 : i32
    scf.if %24 {
      %c0_16 = arith.constant 0 : index
      %c0_17 = arith.constant 0 : index
      %25 = vector.load %arg8[%c0_16, %c0_17] : memref<16x128xf32, #tpu.memory_space<vmem>>, vector<16x128xf32>
      %c0_18 = arith.constant 0 : index
      %c0_19 = arith.constant 0 : index
      %26 = vector.load %arg7[%c0_18, %c0_19] : memref<16x128xf32, #tpu.memory_space<vmem>>, vector<16x128xf32>
      tpu.vector_store %arg7[%c0_18, %c0_19], %25 {strides = array<i32>} : memref<16x128xf32, #tpu.memory_space<vmem>>, vector<16x128xf32>,
    } else {
    }
    return
  }
  func.func @transform_0(%arg0: i32, %arg1: i32, %arg2: i32) -> (i32, i32) {
    %c0_i32 = arith.constant 0 : i32
    %c0_i32_0 = arith.constant 0 : i32
    return %arg0, %c0_i32 : i32, i32
  }
  func.func @transform_1(%arg0: i32, %arg1: i32, %arg2: i32) -> (i32, i32) {
    %c0_i32 = arith.constant 0 : i32
    %c0_i32_0 = arith.constant 0 : i32
    return %c0_i32, %arg2 : i32, i32
  }
  func.func @transform_2(%arg0: i32, %arg1: i32, %arg2: i32) -> (i32, i32) {
    %c0_i32 = arith.constant 0 : i32
    %c0_i32_0 = arith.constant 0 : i32
    return %c0_i32, %arg2 : i32, i32
  }
  func.func @transform_3(%arg0: i32, %arg1: i32, %arg2: i32) -> (i32, i32) {
    %c0_i32 = arith.constant 0 : i32
    return %arg2, %arg1 : i32, i32
  }
  func.func @transform_4(%arg0: i32, %arg1: i32, %arg2: i32) -> (i32, i32) {
    %c0_i32 = arith.constant 0 : i32
    return %arg0, %arg1 : i32, i32
  }
}

</mosaic_0001>

<llo_original>
// kernel: tpu_custom_call.1
$region0: #{tpu_custom_call.1}
  #allocation0 [shape = 'u32[]', space=smem, size = 0x4, offset = 0x4, fixed_abs, tag = 'smem constant byte address 0x4 - core index']
  #allocation1 [shape = 'u32[144,128]{1,0:T(1,128)}', space=vmem, size = 0x12000, scoped, tag = 'internal scratch']
  #allocation2 [shape = 'f32[16,128]{1,0:T(8,128)}', space=vmem, size = 0x2000, scoped, tag = 'scratch operand']
  %s0 = inlined_call_operand.hbm [shape: bf16[16,128], index: 0, kind: input, shape index: {}]
  %s1 = inlined_call_operand.hbm [shape: bf16[128,512], index: 1, kind: input, shape index: {}]
  %s2 = inlined_call_operand.hbm [shape: bf16[128,512], index: 2, kind: input, shape index: {}]
  %s3 = inlined_call_operand.hbm [shape: bf16[512,128], index: 3, kind: input, shape index: {}]
  %s4 = inlined_call_operand.hbm [shape: f32[16,128], index: 4, kind: output, shape index: {}]
  %s5 = sld [smem:[#allocation0]]
  $region54: #{tpu_custom_call.1} parent=0
    _
  %s7 = ssub.s32 1, %s5
  %s8 = scalar_select 0, %s7, %s5
  $region1: #{tpu_custom_call.1} parent=0
    #allocation3 [shape = 'u8[4096]{0}', space=vmem, size = 0x1000, scoped, tag = 'input window, operand 0, single buffered']
    #allocation4 [shape = 's32[1]{0}', space=sflag, size = 0x4, scoped, tag = 'scoped memory for tpu_custom_call.1']
    #allocation5 [shape = 's32[1]{0}', space=sflag, size = 0x4, scoped, tag = 'scoped memory for tpu_custom_call.1']
    #allocation6 [shape = 'u8[131072]{0}', space=vmem, size = 0x20000, scoped, tag = 'input window, operand 1, single buffered']
    #allocation7 [shape = 's32[1]{0}', space=sflag, size = 0x4, scoped, tag = 'scoped memory for tpu_custom_call.1']
    #allocation8 [shape = 'u8[131072]{0}', space=vmem, size = 0x20000, scoped, tag = 'input window, operand 2, single buffered']
    #allocation9 [shape = 'u8[131072]{0}', space=vmem, size = 0x20000, scoped, tag = 'input window, operand 3, single buffered']
    #allocation10 [shape = 's32[1]{0}', space=sflag, size = 0x4, scoped, tag = 'scoped memory for tpu_custom_call.1']
    #allocation11 [shape = 'u8[8192]{0}', space=vmem, size = 0x2000, scoped, tag = 'output window, operand 0, single buffered']
    %9 = vsyncpa [#allocation4], 0
    %10 = vsyncpa [#allocation7], 0
    %11 = vsyncpa [#allocation10], 0
    %12 = vsyncpa [#allocation5], 0
    // Predicated region
    $region2: #{tpu_custom_call.1} parent=1 // pred_check
      _
    $region3: #{tpu_custom_call.1} parent=1 // pred_check_branch
      %14 = sbr.rel (0) target = $region5
    $region4: #{tpu_custom_call.1} parent=1 // pred_region
      %s16 = ssub.s32 128, 128
      %17 = vsyncadd [#allocation4], %s16
      %s18 = sshll.u32 [#allocation3], 4
      %s19 = int_to_ptr.vmem [resolvable:$true] %s18
      %24 = dma.hbm_to_vmem [thread:$0]  %s0, 128, %s19, [#allocation4], 64, 64, 4
    $region5: #{tpu_custom_call.1} parent=1 // pred_fallthru
      _
    // Predicated region
    $region6: #{tpu_custom_call.1} parent=1 // pred_check
      _
    $region7: #{tpu_custom_call.1} parent=1 // pred_check_branch
      %26 = sbr.rel (0) target = $region9
    $region8: #{tpu_custom_call.1} parent=1 // pred_region
      %s28 = ssub.s32 4096, 4096
      %29 = vsyncadd [#allocation7], %s28
      %s30 = sshll.u32 [#allocation6], 4
      %s31 = int_to_ptr.vmem [resolvable:$true] %s30
      %36 = dma.hbm_to_vmem [thread:$0]  %s1, 4096, %s31, [#allocation7], 256, 256, 16
    $region9: #{tpu_custom_call.1} parent=1 // pred_fallthru
      _
    // Predicated region
    $region10: #{tpu_custom_call.1} parent=1 // pred_check
      _
    $region11: #{tpu_custom_call.1} parent=1 // pred_check_branch
      %38 = sbr.rel (0) target = $region13
    $region12: #{tpu_custom_call.1} parent=1 // pred_region
      %s40 = ssub.s32 4096, 4096
      %41 = vsyncadd [#allocation7], %s40
      %s42 = sshll.u32 [#allocation8], 4
      %s43 = int_to_ptr.vmem [resolvable:$true] %s42
      %48 = dma.hbm_to_vmem [thread:$0]  %s2, 4096, %s43, [#allocation7], 256, 256, 16
    $region13: #{tpu_custom_call.1} parent=1 // pred_fallthru
      _
    // Predicated region
    $region14: #{tpu_custom_call.1} parent=1 // pred_check
      _
    $region15: #{tpu_custom_call.1} parent=1 // pred_check_branch
      %50 = sbr.rel (0) target = $region17
    $region16: #{tpu_custom_call.1} parent=1 // pred_region
      %s52 = ssub.s32 4096, 4096
      %53 = vsyncadd [#allocation10], %s52
      %s54 = sshll.u32 [#allocation9], 4
      %s55 = int_to_ptr.vmem [resolvable:$true] %s54
      %60 = dma.hbm_to_vmem [thread:$0]  %s3, 4096, %s55, [#allocation10], 64, 64, 4
    $region17: #{tpu_custom_call.1} parent=1 // pred_fallthru
      _
    // Predicated region
    $region18: #{tpu_custom_call.1} parent=1 // pred_check
      _
    $region19: #{tpu_custom_call.1} parent=1 // pred_check_branch
      %62 = sbr.rel (0) target = $region21
    $region20: #{tpu_custom_call.1} parent=1 // pred_region
      %63 = dma.done [#allocation4], 128
    $region21: #{tpu_custom_call.1} parent=1 // pred_fallthru
      _
    // Predicated region
    $region22: #{tpu_custom_call.1} parent=1 // pred_check
      _
    $region23: #{tpu_custom_call.1} parent=1 // pred_check_branch
      %65 = sbr.rel (0) target = $region25
    $region24: #{tpu_custom_call.1} parent=1 // pred_region
      %66 = dma.done [#allocation7], 4096
    $region25: #{tpu_custom_call.1} parent=1 // pred_fallthru
      _
    // Predicated region
    $region26: #{tpu_custom_call.1} parent=1 // pred_check
      _
    $region27: #{tpu_custom_call.1} parent=1 // pred_check_branch
      %68 = sbr.rel (0) target = $region29
    $region28: #{tpu_custom_call.1} parent=1 // pred_region
      %69 = dma.done [#allocation7], 4096
    $region29: #{tpu_custom_call.1} parent=1 // pred_fallthru
      _
    // Predicated region
    $region30: #{tpu_custom_call.1} parent=1 // pred_check
      _
    $region31: #{tpu_custom_call.1} parent=1 // pred_check_branch
      %71 = sbr.rel (0) target = $region33
    $region32: #{tpu_custom_call.1} parent=1 // pred_region
      %72 = dma.done [#allocation10], 4096
    $region33: #{tpu_custom_call.1} parent=1 // pred_fallthru
      _
    %v74 = vld [vmem:[#allocation3] sm:$0xf]
    %v75 = vld [vmem:[#allocation3 + $0x4] sm:$0xf]
    %v76 = vld [vmem:[#allocation6] sm:$0xff]
    %v77 = vld [vmem:[#allocation6 + $0x8] sm:$0xff]
    %v78 = vld [vmem:[#allocation6 + $0x10] sm:$0xff]
    %v79 = vld [vmem:[#allocation6 + $0x18] sm:$0xff]
    %v80 = vld [vmem:[#allocation6 + $0x20] sm:$0xff]
    %v81 = vld [vmem:[#allocation6 + $0x28] sm:$0xff]
    %v82 = vld [vmem:[#allocation6 + $0x30] sm:$0xff]
    %v83 = vld [vmem:[#allocation6 + $0x38] sm:$0xff]
    %v84 = vld [vmem:[#allocation6 + $0x40] sm:$0xff]
    %v85 = vld [vmem:[#allocation6 + $0x48] sm:$0xff]
    %v86 = vld [vmem:[#allocation6 + $0x50] sm:$0xff]
    %v87 = vld [vmem:[#allocation6 + $0x58] sm:$0xff]
    %v88 = vld [vmem:[#allocation6 + $0x60] sm:$0xff]
    %v89 = vld [vmem:[#allocation6 + $0x68] sm:$0xff]
    %v90 = vld [vmem:[#allocation6 + $0x70] sm:$0xff]
    %v91 = vld [vmem:[#allocation6 + $0x78] sm:$0xff]
    %v92 = vld [vmem:[#allocation6 + $0x80] sm:$0xff]
    %v93 = vld [vmem:[#allocation6 + $0x88] sm:$0xff]
    %v94 = vld [vmem:[#allocation6 + $0x90] sm:$0xff]
    %v95 = vld [vmem:[#allocation6 + $0x98] sm:$0xff]
    %v96 = vld [vmem:[#allocation6 + $0xa0] sm:$0xff]
    %v97 = vld [vmem:[#allocation6 + $0xa8] sm:$0xff]
    %v98 = vld [vmem:[#allocation6 + $0xb0] sm:$0xff]
    %v99 = vld [vmem:[#allocation6 + $0xb8] sm:$0xff]
    %v100 = vld [vmem:[#allocation6 + $0xc0] sm:$0xff]
    %v101 = vld [vmem:[#allocation6 + $0xc8] sm:$0xff]
    %v102 = vld [vmem:[#allocation6 + $0xd0] sm:$0xff]
    %v103 = vld [vmem:[#allocation6 + $0xd8] sm:$0xff]
    %v104 = vld [vmem:[#allocation6 + $0xe0] sm:$0xff]
    %v105 = vld [vmem:[#allocation6 + $0xe8] sm:$0xff]
    %v106 = vld [vmem:[#allocation6 + $0xf0] sm:$0xff]
    %v107 = vld [vmem:[#allocation6 + $0xf8] sm:$0xff]
    %v110 = vunpack.c.l.b16 %v74
    %v111 = vunpack.c.l.b16 %v75
    %v112 = vpack.c.b16 %v111, %v110
    %v146 = vunpack.c.l.b16 %v76
    %v147 = vunpack.c.h.b16 %v76
    %v148 = vunpack.c.l.b16 %v77
    %v149 = vunpack.c.h.b16 %v77
    %v150 = vunpack.c.l.b16 %v78
    %v151 = vunpack.c.h.b16 %v78
    %v152 = vunpack.c.l.b16 %v79
    %v153 = vunpack.c.h.b16 %v79
    %v154 = vunpack.c.l.b16 %v80
    %v155 = vunpack.c.h.b16 %v80
    %v156 = vunpack.c.l.b16 %v81
    %v157 = vunpack.c.h.b16 %v81
    %v158 = vunpack.c.l.b16 %v82
    %v159 = vunpack.c.h.b16 %v82
    %v160 = vunpack.c.l.b16 %v83
    %v161 = vunpack.c.h.b16 %v83
    %v162 = vunpack.c.l.b16 %v84
    %v163 = vunpack.c.h.b16 %v84
    %v164 = vunpack.c.l.b16 %v85
    %v165 = vunpack.c.h.b16 %v85
    %v166 = vunpack.c.l.b16 %v86
    %v167 = vunpack.c.h.b16 %v86
    %v168 = vunpack.c.l.b16 %v87
    %v169 = vunpack.c.h.b16 %v87
    %v170 = vunpack.c.l.b16 %v88
    %v171 = vunpack.c.h.b16 %v88
    %v172 = vunpack.c.l.b16 %v89
    %v173 = vunpack.c.h.b16 %v89
    %v174 = vunpack.c.l.b16 %v90
    %v175 = vunpack.c.h.b16 %v90
    %v176 = vunpack.c.l.b16 %v91
    %v177 = vunpack.c.h.b16 %v91
    %v178 = vunpack.c.l.b16 %v92
    %v179 = vunpack.c.h.b16 %v92
    %v180 = vunpack.c.l.b16 %v93
    %v181 = vunpack.c.h.b16 %v93
    %v182 = vunpack.c.l.b16 %v94
    %v183 = vunpack.c.h.b16 %v94
    %v184 = vunpack.c.l.b16 %v95
    %v185 = vunpack.c.h.b16 %v95
    %v186 = vunpack.c.l.b16 %v96
    %v187 = vunpack.c.h.b16 %v96
    %v188 = vunpack.c.l.b16 %v97
    %v189 = vunpack.c.h.b16 %v97
    %v190 = vunpack.c.l.b16 %v98
    %v191 = vunpack.c.h.b16 %v98
    %v192 = vunpack.c.l.b16 %v99
    %v193 = vunpack.c.h.b16 %v99
    %v194 = vunpack.c.l.b16 %v100
    %v195 = vunpack.c.h.b16 %v100
    %v196 = vunpack.c.l.b16 %v101
    %v197 = vunpack.c.h.b16 %v101
    %v198 = vunpack.c.l.b16 %v102
    %v199 = vunpack.c.h.b16 %v102
    %v200 = vunpack.c.l.b16 %v103
    %v201 = vunpack.c.h.b16 %v103
    %v202 = vunpack.c.l.b16 %v104
    %v203 = vunpack.c.h.b16 %v104
    %v204 = vunpack.c.l.b16 %v105
    %v205 = vunpack.c.h.b16 %v105
    %v206 = vunpack.c.l.b16 %v106
    %v207 = vunpack.c.h.b16 %v106
    %v208 = vunpack.c.l.b16 %v107
    %v209 = vunpack.c.h.b16 %v107
    %v210 = vpack.c.b16 %v150, %v146
    %v211 = vpack.c.b16 %v151, %v147
    %v212 = vpack.c.b16 %v152, %v148
    %v213 = vpack.c.b16 %v153, %v149
    %v214 = vpack.c.b16 %v158, %v154
    %v215 = vpack.c.b16 %v159, %v155
    %v216 = vpack.c.b16 %v160, %v156
    %v217 = vpack.c.b16 %v161, %v157
    %v218 = vpack.c.b16 %v166, %v162
    %v219 = vpack.c.b16 %v167, %v163
    %v220 = vpack.c.b16 %v168, %v164
    %v221 = vpack.c.b16 %v169, %v165
    %v222 = vpack.c.b16 %v174, %v170
    %v223 = vpack.c.b16 %v175, %v171
    %v224 = vpack.c.b16 %v176, %v172
    %v225 = vpack.c.b16 %v177, %v173
    %v226 = vpack.c.b16 %v182, %v178
    %v227 = vpack.c.b16 %v183, %v179
    %v228 = vpack.c.b16 %v184, %v180
    %v229 = vpack.c.b16 %v185, %v181
    %v230 = vpack.c.b16 %v190, %v186
    %v231 = vpack.c.b16 %v191, %v187
    %v232 = vpack.c.b16 %v192, %v188
    %v233 = vpack.c.b16 %v193, %v189
    %v234 = vpack.c.b16 %v198, %v194
    %v235 = vpack.c.b16 %v199, %v195
    %v236 = vpack.c.b16 %v200, %v196
    %v237 = vpack.c.b16 %v201, %v197
    %v238 = vpack.c.b16 %v206, %v202
    %v239 = vpack.c.b16 %v207, %v203
    %v240 = vpack.c.b16 %v208, %v204
    %v241 = vpack.c.b16 %v209, %v205
    %274 = vmatprep.subr.bf16.mxu0 %v211
    %275 = vmatpush1.bf16.msra.mxu0 %v210
    %276 = vmatprep.subr.bf16.mxu0 %v215
    %277 = vmatpush1.bf16.msra.mxu0 %v214
    %278 = vmatprep.subr.bf16.mxu0 %v219
    %279 = vmatpush1.bf16.msra.mxu0 %v218
    %280 = vmatprep.subr.bf16.mxu0 %v223
    %281 = vmatpush1.bf16.msra.mxu0 %v222
    %282 = vmatprep.subr.bf16.mxu0 %v227
    %283 = vmatpush1.bf16.msra.mxu0 %v226
    %284 = vmatprep.subr.bf16.mxu0 %v231
    %285 = vmatpush1.bf16.msra.mxu0 %v230
    %286 = vmatprep.subr.bf16.mxu0 %v235
    %287 = vmatpush1.bf16.msra.mxu0 %v234
    %288 = vmatprep.subr.bf16.mxu0 %v239
    %289 = vmatpush1.bf16.msra.mxu0 %v238
    %290 = vmatprep.subr.bf16.mxu0 0
    %291 = vmatpush1.bf16.msra.mxu0 0
    %292 = vmatprep.subr.bf16.mxu0 0
    %293 = vmatpush1.bf16.msra.mxu0 0
    %294 = vmatprep.subr.bf16.mxu0 0
    %295 = vmatpush1.bf16.msra.mxu0 0
    %296 = vmatprep.subr.bf16.mxu0 0
    %297 = vmatpush1.bf16.msra.mxu0 0
    %298 = vmatprep.subr.bf16.mxu0 0
    %299 = vmatpush1.bf16.msra.mxu0 0
    %300 = vmatprep.subr.bf16.mxu0 0
    %301 = vmatpush1.bf16.msra.mxu0 0
    %302 = vmatprep.subr.bf16.mxu0 0
    %303 = vmatpush1.bf16.msra.mxu0 0
    %304 = vmatprep.subr.bf16.mxu0 0
    %305 = vmatpush1.bf16.msra.mxu0 0
    %306 = vmatprep.mubr.bf16.mxu0 0
    %307 = vmatmul.mubr.bf16.gmra.mrb[0].mxu0 %v112
    %v308 = vpop.f32.mrb[0].mxu0
    %v309 = vadd.f32 0.0, %v308
    %v310 = vpop.f32.mrb[0].mxu0
    %v311 = vadd.f32 0.0, %v310
    %v312 = vpop.f32.mrb[0].mxu0
    %v313 = vadd.f32 0.0, %v312
    %v314 = vpop.f32.mrb[0].mxu0
    %v315 = vadd.f32 0.0, %v314
    %316 = vdwg.mxu0
    %317 = vmatprep.subr.bf16.mxu0 %v213
    %318 = vmatpush1.bf16.msra.mxu0 %v212
    %319 = vmatprep.subr.bf16.mxu0 %v217
    %320 = vmatpush1.bf16.msra.mxu0 %v216
    %321 = vmatprep.subr.bf16.mxu0 %v221
    %322 = vmatpush1.bf16.msra.mxu0 %v220
    %323 = vmatprep.subr.bf16.mxu0 %v225
    %324 = vmatpush1.bf16.msra.mxu0 %v224
    %325 = vmatprep.subr.bf16.mxu0 %v229
    %326 = vmatpush1.bf16.msra.mxu0 %v228
    %327 = vmatprep.subr.bf16.mxu0 %v233
    %328 = vmatpush1.bf16.msra.mxu0 %v232
    %329 = vmatprep.subr.bf16.mxu0 %v237
    %330 = vmatpush1.bf16.msra.mxu0 %v236
    %331 = vmatprep.subr.bf16.mxu0 %v241
    %332 = vmatpush1.bf16.msra.mxu0 %v240
    %333 = vmatprep.subr.bf16.mxu0 0
    %334 = vmatpush1.bf16.msra.mxu0 0
    %335 = vmatprep.subr.bf16.mxu0 0
    %336 = vmatpush1.bf16.msra.mxu0 0
    %337 = vmatprep.subr.bf16.mxu0 0
    %338 = vmatpush1.bf16.msra.mxu0 0
    %339 = vmatprep.subr.bf16.mxu0 0
    %340 = vmatpush1.bf16.msra.mxu0 0
    %341 = vmatprep.subr.bf16.mxu0 0
    %342 = vmatpush1.bf16.msra.mxu0 0
    %343 = vmatprep.subr.bf16.mxu0 0
    %344 = vmatpush1.bf16.msra.mxu0 0
    %345 = vmatprep.subr.bf16.mxu0 0
    %346 = vmatpush1.bf16.msra.mxu0 0
    %347 = vmatprep.subr.bf16.mxu0 0
    %348 = vmatpush1.bf16.msra.mxu0 0
    %349 = vmatprep.mubr.bf16.mxu0 0
    %350 = vmatmul.mubr.bf16.gmra.mrb[0].mxu0 %v112
    %v351 = vpop.f32.mrb[0].mxu0
    %v352 = vadd.f32 0.0, %v351
    %v353 = vpop.f32.mrb[0].mxu0
    %v354 = vadd.f32 0.0, %v353
    %v355 = vpop.f32.mrb[0].mxu0
    %v356 = vadd.f32 0.0, %v355
    %v357 = vpop.f32.mrb[0].mxu0
    %v358 = vadd.f32 0.0, %v357
    %359 = vdwg.mxu0
    %v360 = vld [vmem:[#allocation8] sm:$0xff]
    %v361 = vld [vmem:[#allocation8 + $0x8] sm:$0xff]
    %v362 = vld [vmem:[#allocation8 + $0x10] sm:$0xff]
    %v363 = vld [vmem:[#allocation8 + $0x18] sm:$0xff]
    %v364 = vld [vmem:[#allocation8 + $0x20] sm:$0xff]
    %v365 = vld [vmem:[#allocation8 + $0x28] sm:$0xff]
    %v366 = vld [vmem:[#allocation8 + $0x30] sm:$0xff]
    %v367 = vld [vmem:[#allocation8 + $0x38] sm:$0xff]
    %v368 = vld [vmem:[#allocation8 + $0x40] sm:$0xff]
    %v369 = vld [vmem:[#allocation8 + $0x48] sm:$0xff]
    %v370 = vld [vmem:[#allocation8 + $0x50] sm:$0xff]
    %v371 = vld [vmem:[#allocation8 + $0x58] sm:$0xff]
    %v372 = vld [vmem:[#allocation8 + $0x60] sm:$0xff]
    %v373 = vld [vmem:[#allocation8 + $0x68] sm:$0xff]
    %v374 = vld [vmem:[#allocation8 + $0x70] sm:$0xff]
    %v375 = vld [vmem:[#allocation8 + $0x78] sm:$0xff]
    %v376 = vld [vmem:[#allocation8 + $0x80] sm:$0xff]
    %v377 = vld [vmem:[#allocation8 + $0x88] sm:$0xff]
    %v378 = vld [vmem:[#allocation8 + $0x90] sm:$0xff]
    %v379 = vld [vmem:[#allocation8 + $0x98] sm:$0xff]
    %v380 = vld [vmem:[#allocation8 + $0xa0] sm:$0xff]
    %v381 = vld [vmem:[#allocation8 + $0xa8] sm:$0xff]
    %v382 = vld [vmem:[#allocation8 + $0xb0] sm:$0xff]
    %v383 = vld [vmem:[#allocation8 + $0xb8] sm:$0xff]
    %v384 = vld [vmem:[#allocation8 + $0xc0] sm:$0xff]
    %v385 = vld [vmem:[#allocation8 + $0xc8] sm:$0xff]
    %v386 = vld [vmem:[#allocation8 + $0xd0] sm:$0xff]
    %v387 = vld [vmem:[#allocation8 + $0xd8] sm:$0xff]
    %v388 = vld [vmem:[#allocation8 + $0xe0] sm:$0xff]
    %v389 = vld [vmem:[#allocation8 + $0xe8] sm:$0xff]
    %v390 = vld [vmem:[#allocation8 + $0xf0] sm:$0xff]
    %v391 = vld [vmem:[#allocation8 + $0xf8] sm:$0xff]
    %v424 = vunpack.c.l.b16 %v360
    %v425 = vunpack.c.h.b16 %v360
    %v426 = vunpack.c.l.b16 %v361
    %v427 = vunpack.c.h.b16 %v361
    %v428 = vunpack.c.l.b16 %v362
    %v429 = vunpack.c.h.b16 %v362
    %v430 = vunpack.c.l.b16 %v363
    %v431 = vunpack.c.h.b16 %v363
    %v432 = vunpack.c.l.b16 %v364
    %v433 = vunpack.c.h.b16 %v364
    %v434 = vunpack.c.l.b16 %v365
    %v435 = vunpack.c.h.b16 %v365
    %v436 = vunpack.c.l.b16 %v366
    %v437 = vunpack.c.h.b16 %v366
    %v438 = vunpack.c.l.b16 %v367
    %v439 = vunpack.c.h.b16 %v367
    %v440 = vunpack.c.l.b16 %v368
    %v441 = vunpack.c.h.b16 %v368
    %v442 = vunpack.c.l.b16 %v369
    %v443 = vunpack.c.h.b16 %v369
    %v444 = vunpack.c.l.b16 %v370
    %v445 = vunpack.c.h.b16 %v370
    %v446 = vunpack.c.l.b16 %v371
    %v447 = vunpack.c.h.b16 %v371
    %v448 = vunpack.c.l.b16 %v372
    %v449 = vunpack.c.h.b16 %v372
    %v450 = vunpack.c.l.b16 %v373
    %v451 = vunpack.c.h.b16 %v373
    %v452 = vunpack.c.l.b16 %v374
    %v453 = vunpack.c.h.b16 %v374
    %v454 = vunpack.c.l.b16 %v375
    %v455 = vunpack.c.h.b16 %v375
    %v456 = vunpack.c.l.b16 %v376
    %v457 = vunpack.c.h.b16 %v376
    %v458 = vunpack.c.l.b16 %v377
    %v459 = vunpack.c.h.b16 %v377
    %v460 = vunpack.c.l.b16 %v378
    %v461 = vunpack.c.h.b16 %v378
    %v462 = vunpack.c.l.b16 %v379
    %v463 = vunpack.c.h.b16 %v379
    %v464 = vunpack.c.l.b16 %v380
    %v465 = vunpack.c.h.b16 %v380
    %v466 = vunpack.c.l.b16 %v381
    %v467 = vunpack.c.h.b16 %v381
    %v468 = vunpack.c.l.b16 %v382
    %v469 = vunpack.c.h.b16 %v382
    %v470 = vunpack.c.l.b16 %v383
    %v471 = vunpack.c.h.b16 %v383
    %v472 = vunpack.c.l.b16 %v384
    %v473 = vunpack.c.h.b16 %v384
    %v474 = vunpack.c.l.b16 %v385
    %v475 = vunpack.c.h.b16 %v385
    %v476 = vunpack.c.l.b16 %v386
    %v477 = vunpack.c.h.b16 %v386
    %v478 = vunpack.c.l.b16 %v387
    %v479 = vunpack.c.h.b16 %v387
    %v480 = vunpack.c.l.b16 %v388
    %v481 = vunpack.c.h.b16 %v388
    %v482 = vunpack.c.l.b16 %v389
    %v483 = vunpack.c.h.b16 %v389
    %v484 = vunpack.c.l.b16 %v390
    %v485 = vunpack.c.h.b16 %v390
    %v486 = vunpack.c.l.b16 %v391
    %v487 = vunpack.c.h.b16 %v391
    %v488 = vpack.c.b16 %v428, %v424
    %v489 = vpack.c.b16 %v429, %v425
    %v490 = vpack.c.b16 %v430, %v426
    %v491 = vpack.c.b16 %v431, %v427
    %v492 = vpack.c.b16 %v436, %v432
    %v493 = vpack.c.b16 %v437, %v433
    %v494 = vpack.c.b16 %v438, %v434
    %v495 = vpack.c.b16 %v439, %v435
    %v496 = vpack.c.b16 %v444, %v440
    %v497 = vpack.c.b16 %v445, %v441
    %v498 = vpack.c.b16 %v446, %v442
    %v499 = vpack.c.b16 %v447, %v443
    %v500 = vpack.c.b16 %v452, %v448
    %v501 = vpack.c.b16 %v453, %v449
    %v502 = vpack.c.b16 %v454, %v450
    %v503 = vpack.c.b16 %v455, %v451
    %v504 = vpack.c.b16 %v460, %v456
    %v505 = vpack.c.b16 %v461, %v457
    %v506 = vpack.c.b16 %v462, %v458
    %v507 = vpack.c.b16 %v463, %v459
    %v508 = vpack.c.b16 %v468, %v464
    %v509 = vpack.c.b16 %v469, %v465
    %v510 = vpack.c.b16 %v470, %v466
    %v511 = vpack.c.b16 %v471, %v467
    %v512 = vpack.c.b16 %v476, %v472
    %v513 = vpack.c.b16 %v477, %v473
    %v514 = vpack.c.b16 %v478, %v474
    %v515 = vpack.c.b16 %v479, %v475
    %v516 = vpack.c.b16 %v484, %v480
    %v517 = vpack.c.b16 %v485, %v481
    %v518 = vpack.c.b16 %v486, %v482
    %v519 = vpack.c.b16 %v487, %v483
    %552 = vmatprep.subr.bf16.mxu0 %v489
    %553 = vmatpush1.bf16.msra.mxu0 %v488
    %554 = vmatprep.subr.bf16.mxu0 %v493
    %555 = vmatpush1.bf16.msra.mxu0 %v492
    %556 = vmatprep.subr.bf16.mxu0 %v497
    %557 = vmatpush1.bf16.msra.mxu0 %v496
    %558 = vmatprep.subr.bf16.mxu0 %v501
    %559 = vmatpush1.bf16.msra.mxu0 %v500
    %560 = vmatprep.subr.bf16.mxu0 %v505
    %561 = vmatpush1.bf16.msra.mxu0 %v504
    %562 = vmatprep.subr.bf16.mxu0 %v509
    %563 = vmatpush1.bf16.msra.mxu0 %v508
    %564 = vmatprep.subr.bf16.mxu0 %v513
    %565 = vmatpush1.bf16.msra.mxu0 %v512
    %566 = vmatprep.subr.bf16.mxu0 %v517
    %567 = vmatpush1.bf16.msra.mxu0 %v516
    %568 = vmatprep.subr.bf16.mxu0 0
    %569 = vmatpush1.bf16.msra.mxu0 0
    %570 = vmatprep.subr.bf16.mxu0 0
    %571 = vmatpush1.bf16.msra.mxu0 0
    %572 = vmatprep.subr.bf16.mxu0 0
    %573 = vmatpush1.bf16.msra.mxu0 0
    %574 = vmatprep.subr.bf16.mxu0 0
    %575 = vmatpush1.bf16.msra.mxu0 0
    %576 = vmatprep.subr.bf16.mxu0 0
    %577 = vmatpush1.bf16.msra.mxu0 0
    %578 = vmatprep.subr.bf16.mxu0 0
    %579 = vmatpush1.bf16.msra.mxu0 0
    %580 = vmatprep.subr.bf16.mxu0 0
    %581 = vmatpush1.bf16.msra.mxu0 0
    %582 = vmatprep.subr.bf16.mxu0 0
    %583 = vmatpush1.bf16.msra.mxu0 0
    %584 = vmatprep.mubr.bf16.mxu0 0
    %585 = vmatmul.mubr.bf16.gmra.mrb[0].mxu0 %v112
    %v586 = vpop.f32.mrb[0].mxu0
    %v587 = vadd.f32 0.0, %v586
    %v588 = vpop.f32.mrb[0].mxu0
    %v589 = vadd.f32 0.0, %v588
    %v590 = vpop.f32.mrb[0].mxu0
    %v591 = vadd.f32 0.0, %v590
    %v592 = vpop.f32.mrb[0].mxu0
    %v593 = vadd.f32 0.0, %v592
    %594 = vdwg.mxu0
    %595 = vmatprep.subr.bf16.mxu0 %v491
    %596 = vmatpush1.bf16.msra.mxu0 %v490
    %597 = vmatprep.subr.bf16.mxu0 %v495
    %598 = vmatpush1.bf16.msra.mxu0 %v494
    %599 = vmatprep.subr.bf16.mxu0 %v499
    %600 = vmatpush1.bf16.msra.mxu0 %v498
    %601 = vmatprep.subr.bf16.mxu0 %v503
    %602 = vmatpush1.bf16.msra.mxu0 %v502
    %603 = vmatprep.subr.bf16.mxu0 %v507
    %604 = vmatpush1.bf16.msra.mxu0 %v506
    %605 = vmatprep.subr.bf16.mxu0 %v511
    %606 = vmatpush1.bf16.msra.mxu0 %v510
    %607 = vmatprep.subr.bf16.mxu0 %v515
    %608 = vmatpush1.bf16.msra.mxu0 %v514
    %609 = vmatprep.subr.bf16.mxu0 %v519
    %610 = vmatpush1.bf16.msra.mxu0 %v518
    %611 = vmatprep.subr.bf16.mxu0 0
    %612 = vmatpush1.bf16.msra.mxu0 0
    %613 = vmatprep.subr.bf16.mxu0 0
    %614 = vmatpush1.bf16.msra.mxu0 0
    %615 = vmatprep.subr.bf16.mxu0 0
    %616 = vmatpush1.bf16.msra.mxu0 0
    %617 = vmatprep.subr.bf16.mxu0 0
    %618 = vmatpush1.bf16.msra.mxu0 0
    %619 = vmatprep.subr.bf16.mxu0 0
    %620 = vmatpush1.bf16.msra.mxu0 0
    %621 = vmatprep.subr.bf16.mxu0 0
    %622 = vmatpush1.bf16.msra.mxu0 0
    %623 = vmatprep.subr.bf16.mxu0 0
    %624 = vmatpush1.bf16.msra.mxu0 0
    %625 = vmatprep.subr.bf16.mxu0 0
    %626 = vmatpush1.bf16.msra.mxu0 0
    %627 = vmatprep.mubr.bf16.mxu0 0
    %628 = vmatmul.mubr.bf16.gmra.mrb[0].mxu0 %v112
    %v629 = vpop.f32.mrb[0].mxu0
    %v630 = vadd.f32 0.0, %v629
    %v631 = vpop.f32.mrb[0].mxu0
    %v632 = vadd.f32 0.0, %v631
    %v633 = vpop.f32.mrb[0].mxu0
    %v634 = vadd.f32 0.0, %v633
    %v635 = vpop.f32.mrb[0].mxu0
    %v636 = vadd.f32 0.0, %v635
    %637 = vdwg.mxu0
    %v638 = vsub.f32 0.0, %v309
    %v639 = vsub.f32 0.0, %v311
    %v640 = vsub.f32 0.0, %v352
    %v641 = vsub.f32 0.0, %v354
    %v642 = vsub.f32 0.0, %v313
    %v643 = vsub.f32 0.0, %v315
    %v644 = vsub.f32 0.0, %v356
    %v645 = vsub.f32 0.0, %v358
    %v646 = vmul.f32 %v638, 1.442695
    %v647 = vpow.pop %v646
    %v648 = vmul.f32 %v639, 1.442695
    %v649 = vpow.pop %v648
    %v650 = vmul.f32 %v640, 1.442695
    %v651 = vpow.pop %v650
    %v652 = vmul.f32 %v641, 1.442695
    %v653 = vpow.pop %v652
    %v654 = vmul.f32 %v642, 1.442695
    %v655 = vpow.pop %v654
    %v656 = vmul.f32 %v643, 1.442695
    %v657 = vpow.pop %v656
    %v658 = vmul.f32 %v644, 1.442695
    %v659 = vpow.pop %v658
    %v660 = vmul.f32 %v645, 1.442695
    %v661 = vpow.pop %v660
    %v662 = vadd.f32 %v647, 1.0
    %v663 = vadd.f32 %v649, 1.0
    %v664 = vadd.f32 %v651, 1.0
    %v665 = vadd.f32 %v653, 1.0
    %v666 = vadd.f32 %v655, 1.0
    %v667 = vadd.f32 %v657, 1.0
    %v668 = vadd.f32 %v659, 1.0
    %v669 = vadd.f32 %v661, 1.0
    %v670 = vrcp.pop %v662
    %v671 = vrcp.pop %v663
    %v672 = vrcp.pop %v664
    %v673 = vrcp.pop %v665
    %v674 = vrcp.pop %v666
    %v675 = vrcp.pop %v667
    %v676 = vrcp.pop %v668
    %v677 = vrcp.pop %v669
    %v678 = vmul.f32 %v309, %v670
    %v679 = vmul.f32 %v311, %v671
    %v680 = vmul.f32 %v352, %v672
    %v681 = vmul.f32 %v354, %v673
    %v682 = vmul.f32 %v313, %v674
    %v683 = vmul.f32 %v315, %v675
    %v684 = vmul.f32 %v356, %v676
    %v685 = vmul.f32 %v358, %v677
    %v686 = vmul.f32 %v678, %v587
    %v687 = vmul.f32 %v679, %v589
    %v688 = vmul.f32 %v680, %v630
    %v689 = vmul.f32 %v681, %v632
    %v690 = vmul.f32 %v682, %v591
    %v691 = vmul.f32 %v683, %v593
    %v692 = vmul.f32 %v684, %v634
    %v693 = vmul.f32 %v685, %v636
    %v694 = vpack.c.bf16 %v690, %v686
    %v695 = vpack.c.bf16 %v691, %v687
    %v696 = vpack.c.bf16 %v692, %v688
    %v697 = vpack.c.bf16 %v693, %v689
    %v698 = vld [vmem:[#allocation9] sm:$0xf]
    %v699 = vld [vmem:[#allocation9 + $0x4] sm:$0xf]
    %v700 = vld [vmem:[#allocation9 + $0x8] sm:$0xf]
    %v701 = vld [vmem:[#allocation9 + $0xc] sm:$0xf]
    %v702 = vld [vmem:[#allocation9 + $0x10] sm:$0xf]
    %v703 = vld [vmem:[#allocation9 + $0x14] sm:$0xf]
    %v704 = vld [vmem:[#allocation9 + $0x18] sm:$0xf]
    %v705 = vld [vmem:[#allocation9 + $0x1c] sm:$0xf]
    %v706 = vld [vmem:[#allocation9 + $0x20] sm:$0xf]
    %v707 = vld [vmem:[#allocation9 + $0x24] sm:$0xf]
    %v708 = vld [vmem:[#allocation9 + $0x28] sm:$0xf]
    %v709 = vld [vmem:[#allocation9 + $0x2c] sm:$0xf]
    %v710 = vld [vmem:[#allocation9 + $0x30] sm:$0xf]
    %v711 = vld [vmem:[#allocation9 + $0x34] sm:$0xf]
    %v712 = vld [vmem:[#allocation9 + $0x38] sm:$0xf]
    %v713 = vld [vmem:[#allocation9 + $0x3c] sm:$0xf]
    %v714 = vld [vmem:[#allocation9 + $0x40] sm:$0xf]
    %v715 = vld [vmem:[#allocation9 + $0x44] sm:$0xf]
    %v716 = vld [vmem:[#allocation9 + $0x48] sm:$0xf]
    %v717 = vld [vmem:[#allocation9 + $0x4c] sm:$0xf]
    %v718 = vld [vmem:[#allocation9 + $0x50] sm:$0xf]
    %v719 = vld [vmem:[#allocation9 + $0x54] sm:$0xf]
    %v720 = vld [vmem:[#allocation9 + $0x58] sm:$0xf]
    %v721 = vld [vmem:[#allocation9 + $0x5c] sm:$0xf]
    %v722 = vld [vmem:[#allocation9 + $0x60] sm:$0xf]
    %v723 = vld [vmem:[#allocation9 + $0x64] sm:$0xf]
    %v724 = vld [vmem:[#allocation9 + $0x68] sm:$0xf]
    %v725 = vld [vmem:[#allocation9 + $0x6c] sm:$0xf]
    %v726 = vld [vmem:[#allocation9 + $0x70] sm:$0xf]
    %v727 = vld [vmem:[#allocation9 + $0x74] sm:$0xf]
    %v728 = vld [vmem:[#allocation9 + $0x78] sm:$0xf]
    %v729 = vld [vmem:[#allocation9 + $0x7c] sm:$0xf]
    %v730 = vld [vmem:[#allocation9 + $0x80] sm:$0xf]
    %v731 = vld [vmem:[#allocation9 + $0x84] sm:$0xf]
    %v732 = vld [vmem:[#allocation9 + $0x88] sm:$0xf]
    %v733 = vld [vmem:[#allocation9 + $0x8c] sm:$0xf]
    %v734 = vld [vmem:[#allocation9 + $0x90] sm:$0xf]
    %v735 = vld [vmem:[#allocation9 + $0x94] sm:$0xf]
    %v736 = vld [vmem:[#allocation9 + $0x98] sm:$0xf]
    %v737 = vld [vmem:[#allocation9 + $0x9c] sm:$0xf]
    %v738 = vld [vmem:[#allocation9 + $0xa0] sm:$0xf]
    %v739 = vld [vmem:[#allocation9 + $0xa4] sm:$0xf]
    %v740 = vld [vmem:[#allocation9 + $0xa8] sm:$0xf]
    %v741 = vld [vmem:[#allocation9 + $0xac] sm:$0xf]
    %v742 = vld [vmem:[#allocation9 + $0xb0] sm:$0xf]
    %v743 = vld [vmem:[#allocation9 + $0xb4] sm:$0xf]
    %v744 = vld [vmem:[#allocation9 + $0xb8] sm:$0xf]
    %v745 = vld [vmem:[#allocation9 + $0xbc] sm:$0xf]
    %v746 = vld [vmem:[#allocation9 + $0xc0] sm:$0xf]
    %v747 = vld [vmem:[#allocation9 + $0xc4] sm:$0xf]
    %v748 = vld [vmem:[#allocation9 + $0xc8] sm:$0xf]
    %v749 = vld [vmem:[#allocation9 + $0xcc] sm:$0xf]
    %v750 = vld [vmem:[#allocation9 + $0xd0] sm:$0xf]
    %v751 = vld [vmem:[#allocation9 + $0xd4] sm:$0xf]
    %v752 = vld [vmem:[#allocation9 + $0xd8] sm:$0xf]
    %v753 = vld [vmem:[#allocation9 + $0xdc] sm:$0xf]
    %v754 = vld [vmem:[#allocation9 + $0xe0] sm:$0xf]
    %v755 = vld [vmem:[#allocation9 + $0xe4] sm:$0xf]
    %v756 = vld [vmem:[#allocation9 + $0xe8] sm:$0xf]
    %v757 = vld [vmem:[#allocation9 + $0xec] sm:$0xf]
    %v758 = vld [vmem:[#allocation9 + $0xf0] sm:$0xf]
    %v759 = vld [vmem:[#allocation9 + $0xf4] sm:$0xf]
    %v760 = vld [vmem:[#allocation9 + $0xf8] sm:$0xf]
    %v761 = vld [vmem:[#allocation9 + $0xfc] sm:$0xf]
    %v826 = vunpack.c.l.b16 %v698
    %v827 = vunpack.c.l.b16 %v699
    %v828 = vunpack.c.l.b16 %v700
    %v829 = vunpack.c.l.b16 %v701
    %v830 = vunpack.c.l.b16 %v702
    %v831 = vunpack.c.l.b16 %v703
    %v832 = vunpack.c.l.b16 %v704
    %v833 = vunpack.c.l.b16 %v705
    %v834 = vunpack.c.l.b16 %v706
    %v835 = vunpack.c.l.b16 %v707
    %v836 = vunpack.c.l.b16 %v708
    %v837 = vunpack.c.l.b16 %v709
    %v838 = vunpack.c.l.b16 %v710
    %v839 = vunpack.c.l.b16 %v711
    %v840 = vunpack.c.l.b16 %v712
    %v841 = vunpack.c.l.b16 %v713
    %v842 = vunpack.c.l.b16 %v714
    %v843 = vunpack.c.l.b16 %v715
    %v844 = vunpack.c.l.b16 %v716
    %v845 = vunpack.c.l.b16 %v717
    %v846 = vunpack.c.l.b16 %v718
    %v847 = vunpack.c.l.b16 %v719
    %v848 = vunpack.c.l.b16 %v720
    %v849 = vunpack.c.l.b16 %v721
    %v850 = vunpack.c.l.b16 %v722
    %v851 = vunpack.c.l.b16 %v723
    %v852 = vunpack.c.l.b16 %v724
    %v853 = vunpack.c.l.b16 %v725
    %v854 = vunpack.c.l.b16 %v726
    %v855 = vunpack.c.l.b16 %v727
    %v856 = vunpack.c.l.b16 %v728
    %v857 = vunpack.c.l.b16 %v729
    %v858 = vunpack.c.l.b16 %v730
    %v859 = vunpack.c.l.b16 %v731
    %v860 = vunpack.c.l.b16 %v732
    %v861 = vunpack.c.l.b16 %v733
    %v862 = vunpack.c.l.b16 %v734
    %v863 = vunpack.c.l.b16 %v735
    %v864 = vunpack.c.l.b16 %v736
    %v865 = vunpack.c.l.b16 %v737
    %v866 = vunpack.c.l.b16 %v738
    %v867 = vunpack.c.l.b16 %v739
    %v868 = vunpack.c.l.b16 %v740
    %v869 = vunpack.c.l.b16 %v741
    %v870 = vunpack.c.l.b16 %v742
    %v871 = vunpack.c.l.b16 %v743
    %v872 = vunpack.c.l.b16 %v744
    %v873 = vunpack.c.l.b16 %v745
    %v874 = vunpack.c.l.b16 %v746
    %v875 = vunpack.c.l.b16 %v747
    %v876 = vunpack.c.l.b16 %v748
    %v877 = vunpack.c.l.b16 %v749
    %v878 = vunpack.c.l.b16 %v750
    %v879 = vunpack.c.l.b16 %v751
    %v880 = vunpack.c.l.b16 %v752
    %v881 = vunpack.c.l.b16 %v753
    %v882 = vunpack.c.l.b16 %v754
    %v883 = vunpack.c.l.b16 %v755
    %v884 = vunpack.c.l.b16 %v756
    %v885 = vunpack.c.l.b16 %v757
    %v886 = vunpack.c.l.b16 %v758
    %v887 = vunpack.c.l.b16 %v759
    %v888 = vunpack.c.l.b16 %v760
    %v889 = vunpack.c.l.b16 %v761
    %v890 = vpack.c.b16 %v827, %v826
    %v891 = vpack.c.b16 %v829, %v828
    %v892 = vpack.c.b16 %v831, %v830
    %v893 = vpack.c.b16 %v833, %v832
    %v894 = vpack.c.b16 %v835, %v834
    %v895 = vpack.c.b16 %v837, %v836
    %v896 = vpack.c.b16 %v839, %v838
    %v897 = vpack.c.b16 %v841, %v840
    %v898 = vpack.c.b16 %v843, %v842
    %v899 = vpack.c.b16 %v845, %v844
    %v900 = vpack.c.b16 %v847, %v846
    %v901 = vpack.c.b16 %v849, %v848
    %v902 = vpack.c.b16 %v851, %v850
    %v903 = vpack.c.b16 %v853, %v852
    %v904 = vpack.c.b16 %v855, %v854
    %v905 = vpack.c.b16 %v857, %v856
    %v906 = vpack.c.b16 %v859, %v858
    %v907 = vpack.c.b16 %v861, %v860
    %v908 = vpack.c.b16 %v863, %v862
    %v909 = vpack.c.b16 %v865, %v864
    %v910 = vpack.c.b16 %v867, %v866
    %v911 = vpack.c.b16 %v869, %v868
    %v912 = vpack.c.b16 %v871, %v870
    %v913 = vpack.c.b16 %v873, %v872
    %v914 = vpack.c.b16 %v875, %v874
    %v915 = vpack.c.b16 %v877, %v876
    %v916 = vpack.c.b16 %v879, %v878
    %v917 = vpack.c.b16 %v881, %v880
    %v918 = vpack.c.b16 %v883, %v882
    %v919 = vpack.c.b16 %v885, %v884
    %v920 = vpack.c.b16 %v887, %v886
    %v921 = vpack.c.b16 %v889, %v888
    %954 = vmatprep.subr.bf16.mxu0 0
    %955 = vmatpush1.bf16.msra.mxu0 %v890
    %956 = vmatprep.subr.bf16.mxu0 0
    %957 = vmatpush1.bf16.msra.mxu0 %v891
    %958 = vmatprep.subr.bf16.mxu0 0
    %959 = vmatpush1.bf16.msra.mxu0 %v892
    %960 = vmatprep.subr.bf16.mxu0 0
    %961 = vmatpush1.bf16.msra.mxu0 %v893
    %962 = vmatprep.subr.bf16.mxu0 0
    %963 = vmatpush1.bf16.msra.mxu0 %v894
    %964 = vmatprep.subr.bf16.mxu0 0
    %965 = vmatpush1.bf16.msra.mxu0 %v895
    %966 = vmatprep.subr.bf16.mxu0 0
    %967 = vmatpush1.bf16.msra.mxu0 %v896
    %968 = vmatprep.subr.bf16.mxu0 0
    %969 = vmatpush1.bf16.msra.mxu0 %v897
    %970 = vmatprep.subr.bf16.mxu0 0
    %971 = vmatpush1.bf16.msra.mxu0 %v898
    %972 = vmatprep.subr.bf16.mxu0 0
    %973 = vmatpush1.bf16.msra.mxu0 %v899
    %974 = vmatprep.subr.bf16.mxu0 0
    %975 = vmatpush1.bf16.msra.mxu0 %v900
    %976 = vmatprep.subr.bf16.mxu0 0
    %977 = vmatpush1.bf16.msra.mxu0 %v901
    %978 = vmatprep.subr.bf16.mxu0 0
    %979 = vmatpush1.bf16.msra.mxu0 %v902
    %980 = vmatprep.subr.bf16.mxu0 0
    %981 = vmatpush1.bf16.msra.mxu0 %v903
    %982 = vmatprep.subr.bf16.mxu0 0
    %983 = vmatpush1.bf16.msra.mxu0 %v904
    %984 = vmatprep.subr.bf16.mxu0 0
    %985 = vmatpush1.bf16.msra.mxu0 %v905
    %986 = vmatprep.mubr.bf16.mxu0 %v695
    %987 = vmatmul.mubr.bf16.gmra.mrb[0].mxu0 %v694
    %v988 = vpop.f32.mrb[0].mxu0
    %v989 = vadd.f32 0.0, %v988
    %v990 = vpop.f32.mrb[0].mxu0
    %v991 = vpop.f32.mrb[0].mxu0
    %v992 = vadd.f32 0.0, %v991
    %v993 = vpop.f32.mrb[0].mxu0
    %994 = vdwg.mxu0
    %995 = vmatprep.subr.bf16.mxu0 0
    %996 = vmatpush1.bf16.msra.mxu0 %v906
    %997 = vmatprep.subr.bf16.mxu0 0
    %998 = vmatpush1.bf16.msra.mxu0 %v907
    %999 = vmatprep.subr.bf16.mxu0 0
    %1000 = vmatpush1.bf16.msra.mxu0 %v908
    %1001 = vmatprep.subr.bf16.mxu0 0
    %1002 = vmatpush1.bf16.msra.mxu0 %v909
    %1003 = vmatprep.subr.bf16.mxu0 0
    %1004 = vmatpush1.bf16.msra.mxu0 %v910
    %1005 = vmatprep.subr.bf16.mxu0 0
    %1006 = vmatpush1.bf16.msra.mxu0 %v911
    %1007 = vmatprep.subr.bf16.mxu0 0
    %1008 = vmatpush1.bf16.msra.mxu0 %v912
    %1009 = vmatprep.subr.bf16.mxu0 0
    %1010 = vmatpush1.bf16.msra.mxu0 %v913
    %1011 = vmatprep.subr.bf16.mxu0 0
    %1012 = vmatpush1.bf16.msra.mxu0 %v914
    %1013 = vmatprep.subr.bf16.mxu0 0
    %1014 = vmatpush1.bf16.msra.mxu0 %v915
    %1015 = vmatprep.subr.bf16.mxu0 0
    %1016 = vmatpush1.bf16.msra.mxu0 %v916
    %1017 = vmatprep.subr.bf16.mxu0 0
    %1018 = vmatpush1.bf16.msra.mxu0 %v917
    %1019 = vmatprep.subr.bf16.mxu0 0
    %1020 = vmatpush1.bf16.msra.mxu0 %v918
    %1021 = vmatprep.subr.bf16.mxu0 0
    %1022 = vmatpush1.bf16.msra.mxu0 %v919
    %1023 = vmatprep.subr.bf16.mxu0 0
    %1024 = vmatpush1.bf16.msra.mxu0 %v920
    %1025 = vmatprep.subr.bf16.mxu0 0
    %1026 = vmatpush1.bf16.msra.mxu0 %v921
    %1027 = vmatprep.mubr.bf16.mxu0 %v697
    %1028 = vmatmul.mubr.bf16.gmra.mrb[0].mxu0 %v696
    %v1029 = vpop.f32.mrb[0].mxu0
    %v1030 = vadd.f32 %v989, %v1029
    %v1031 = vpop.f32.mrb[0].mxu0
    %v1032 = vpop.f32.mrb[0].mxu0
    %v1033 = vadd.f32 %v992, %v1032
    %v1034 = vpop.f32.mrb[0].mxu0
    %1035 = vdwg.mxu0
    %p1036 = scmp.eq.s32.totalorder 0, 0
    // Predicated region
    $region34: #{tpu_custom_call.1} parent=1 // pred_check
      %p1037 = pneg %p1036
    $region35: #{tpu_custom_call.1} parent=1 // pred_check_branch
      %1039 = sbr.rel (%p1037) target = $region37
    $region36: #{tpu_custom_call.1} parent=1 // pred_region
      %1040 = vst [vmem:[#allocation2] sm:$0xff] %v1030
      %1041 = vst [vmem:[#allocation2 + $0x8] sm:$0xff] %v1033
    $region37: #{tpu_custom_call.1} parent=1 // pred_fallthru
      _
    %p1042 = scmp.gt.s32.totalorder 0, 0
    // Predicated region
    $region38: #{tpu_custom_call.1} parent=1 // pred_check
      %p1043 = pneg %p1042
    $region39: #{tpu_custom_call.1} parent=1 // pred_check_branch
      %1045 = sbr.rel (%p1043) target = $region41
    $region40: #{tpu_custom_call.1} parent=1 // pred_region
      %v1046 = vld [vmem:[#allocation2] sm:$0xff]
      %v1047 = vld [vmem:[#allocation2 + $0x8] sm:$0xff]
      %v1048 = vadd.f32 %v1046, %v1030
      %v1049 = vadd.f32 %v1047, %v1033
      %1050 = vst [vmem:[#allocation2] sm:$0xff] %v1048
      %1051 = vst [vmem:[#allocation2 + $0x8] sm:$0xff] %v1049
    $region41: #{tpu_custom_call.1} parent=1 // pred_fallthru
      _
    // Predicated region
    $region42: #{tpu_custom_call.1} parent=1 // pred_check
      %p1052 = pneg %p1036
    $region43: #{tpu_custom_call.1} parent=1 // pred_check_branch
      %1054 = sbr.rel (%p1052) target = $region45
    $region44: #{tpu_custom_call.1} parent=1 // pred_region
      %v1055 = vld [vmem:[#allocation2] sm:$0xff]
      %v1056 = vld [vmem:[#allocation2 + $0x8] sm:$0xff]
      %1057 = vst [vmem:[#allocation11] sm:$0xff] %v1055
      %1058 = vst [vmem:[#allocation11 + $0x8] sm:$0xff] %v1056
    $region45: #{tpu_custom_call.1} parent=1 // pred_fallthru
      _
    // Predicated region
    $region46: #{tpu_custom_call.1} parent=1 // pred_check
      _
    $region47: #{tpu_custom_call.1} parent=1 // pred_check_branch
      %1060 = sbr.rel (0) target = $region49
    $region48: #{tpu_custom_call.1} parent=1 // pred_region
      %s1062 = ssub.s32 256, 256
      %1063 = vsyncadd [#allocation5], %s1062
      %s1064 = sshll.u32 [#allocation11], 4
      %s1065 = int_to_ptr.vmem [resolvable:$true] %s1064
      %1070 = dma.vmem_to_hbm [thread:$0]  %s1065, 256, %s4, [#allocation5], 128, 128, 8
    $region49: #{tpu_custom_call.1} parent=1 // pred_fallthru
      _
    // Predicated region
    $region50: #{tpu_custom_call.1} parent=1 // pred_check
      _
    $region51: #{tpu_custom_call.1} parent=1 // pred_check_branch
      %1072 = sbr.rel (0) target = $region53
    $region52: #{tpu_custom_call.1} parent=1 // pred_region
      %1073 = dma.done [#allocation5], 256
    $region53: #{tpu_custom_call.1} parent=1 // pred_fallthru
      _
    %1074 = vsyncpa [#allocation4], 1
    %1075 = vsyncpa [#allocation7], 1
    %1076 = vsyncpa [#allocation10], 1
    %1077 = vsyncpa [#allocation5], 1

</llo_original>
